<compile_context>
chip_gen: v6e
topology: v6e:2x2x1
jax: 0.10.0
libtpu: 0.0.40
codegen_flags: <defaults>
</compile_context>

<pallas_src>
import functools

import jax
import jax.numpy as jnp
from jax import lax
from jax.experimental import pallas as pl
from jax.experimental.pallas import tpu as pltpu

_SPLITS = 2  # leading "parallel" grid axis (keeps both v7x TensorCores busy)


def _round_up(a, b):
    return (a + b - 1) // b * b


def _smooth_ce_kernel(x_ref, t_ref, out_ref, loss_acc, *,
                      tile_n, n_classes, n_rows, nb_inner, confidence, smoothing):
    p = pl.program_id(0)          # parallel split over the batch
    j = pl.program_id(1)          # reduction over row-tiles inside the split

    @pl.when(j == 0)
    def _():
        loss_acc[...] = jnp.zeros_like(loss_acc)

    x = x_ref[...].astype(jnp.float32)        # (tile_n, C); matches torch's x.float()
    tgt = t_ref[...]                          # (tile_n, 1) int32

    # Mask rows past the end of the batch (ragged last tile / uneven core split).
    # Masking in-kernel avoids an extra HBM pad copy of the inputs.
    row_ids = lax.broadcasted_iota(jnp.int32, (tile_n, 1), 0)
    global_row = (p * nb_inner + j) * tile_n + row_ids
    valid = global_row < n_rows               # (tile_n, 1) bool
    x = jnp.where(valid, x, 0.0)              # keeps exp/log NaN-free on junk rows

    # Numerically stable log-softmax pieces (per row).
    m = jnp.max(x, axis=-1, keepdims=True)
    sum_exp = jnp.sum(jnp.exp(x - m), axis=-1, keepdims=True)
    lse = m + jnp.log(sum_exp)                # logsumexp per row

    col_ids = lax.broadcasted_iota(jnp.int32, (tile_n, n_classes), 1)
    picked = jnp.sum(jnp.where(col_ids == tgt, x, 0.0), axis=-1, keepdims=True)
    mean_x = jnp.sum(x, axis=-1, keepdims=True) * (1.0 / n_classes)

    # loss_i = conf * (lse_i - x[i, t_i]) + smooth * (lse_i - mean_j x[i, j])
    loss = confidence * (lse - picked) + smoothing * (lse - mean_x)
    loss = jnp.where(valid, loss, 0.0)

    loss_acc[...] += loss                     # pure VPU elementwise accumulation

    @pl.when(j == pl.num_programs(1) - 1)
    def _():
        # One cross-sublane reduction per split; lane-dense full-block store.
        out_ref[...] = jnp.full(out_ref.shape, jnp.sum(loss_acc[...]),
                                dtype=out_ref.dtype)


def smooth_cross_entropy(x, target, smoothing=0.05, *, training=True, tile_n=None):
    """SmoothCrossEntropy(smoothing)(x, target); x: (N, C) logits, target: (N,) ids."""
    n_rows, n_classes = x.shape
    confidence = 1.0 - smoothing if training else 1.0
    smooth_w = smoothing if training else 0.0    # eval branch == plain cross entropy

    if tile_n is None:
        # ~2 MB of logits per grid step (HBM-bandwidth-bound kernel), capped at 2048
        # rows so the (tile_n, 1) per-row temporaries stay small in VMEM.
        max_block_bytes = 2 * 1024 * 1024
        by_block = max(8, (max_block_bytes // (n_classes * x.dtype.itemsize)) // 8 * 8)
        tile_n = min(2048, by_block)

    if tile_n >= n_rows:
        tile_n = n_rows                        # one block spans the full batch
    else:
        tile_n = max(8, (tile_n // 8) * 8)     # sublane dim must be a multiple of 8

    nb_total = pl.cdiv(n_rows, tile_n)
    nb_inner = pl.cdiv(nb_total, _SPLITS)

    def blk_idx(p, j):
        # Clamp overshooting (p, j) pairs onto the last real block; their rows are
        # masked out inside the kernel so they contribute nothing.
        return (jnp.minimum(p * nb_inner + j, nb_total - 1), 0)

    t2 = target.reshape(n_rows, 1).astype(jnp.int32)

    kernel = functools.partial(
        _smooth_ce_kernel, tile_n=tile_n, n_classes=n_classes, n_rows=n_rows,
        nb_inner=nb_inner, confidence=confidence, smoothing=smooth_w)

    partial = pl.pallas_call(
        kernel,
        out_shape=jax.ShapeDtypeStruct((_SPLITS, 8, 128), jnp.float32),
        grid_spec=pltpu.PrefetchScalarGridSpec(
            num_scalar_prefetch=0,
            grid=(_SPLITS, nb_inner),
            in_specs=[
                pl.BlockSpec((tile_n, n_classes), blk_idx),
                pl.BlockSpec((tile_n, 1), blk_idx),
            ],
            out_specs=pl.BlockSpec((1, 8, 128), lambda p, j: (p, 0, 0)),
            scratch_shapes=[pltpu.VMEM((tile_n, 1), jnp.float32)],
        ),
        compiler_params=pltpu.CompilerParams(
            dimension_semantics=("parallel", "arbitrary"),
            vmem_limit_bytes=32 * 1024 * 1024,
        ),
    )(x, t2)

    # Each split wrote its partial loss sum (broadcast over an (8,128) block).
    return jnp.sum(partial[:, 0, 0]) / n_rows


def smooth_cross_entropy_reference(x, target, smoothing=0.05):
    """Pure-JAX reference mirroring the PyTorch training forward."""
    x = x.astype(jnp.float32)
    _, c = x.shape
    logprobs = jax.nn.log_softmax(x, axis=-1)
    onehot = jax.nn.one_hot(target, c, dtype=jnp.float32)
    nll = -jnp.sum(logprobs * onehot, axis=-1)
    smooth = -jnp.mean(logprobs, axis=-1)
    loss = (1.0 - smoothing) * nll + smoothing * smooth
    return jnp.mean(loss)


if __name__ == "__main__":
    key = jax.random.PRNGKey(0)
    k1, k2 = jax.random.split(key)

    # (batch, num_classes); batch deliberately not a multiple of the 128-row tile
    # so the in-kernel masking and both grid axes are exercised.
    N, C = 1000, 32
    x = jax.random.normal(k1, (N, C), dtype=jnp.float32) * 3.0
    target = jax.random.randint(k2, (N,), 0, C, dtype=jnp.int32)

    out = smooth_cross_entropy(x, target, smoothing=0.05, tile_n=128)
    out = jax.block_until_ready(out)

    ref = smooth_cross_entropy_reference(x, target, smoothing=0.05)
    assert jnp.allclose(out, ref, rtol=1e-4, atol=1e-5), (out, ref)

    print("KERNEL_OK")
</pallas_src>

<mosaic_0001>
module attributes {stable_mosaic.version = 11 : i64} {
  func.func @_smooth_ce_kernel(%arg0: i32, %arg1: i32, %arg2: memref<128x32xf32, #tpu.memory_space<vmem>>, %arg3: memref<128x1xi32, #tpu.memory_space<vmem>>, %arg4: memref<1x8x128xf32, #tpu.memory_space<vmem>>, %arg5: memref<128x1xf32, #tpu.memory_space<vmem>>) attributes {dimension_semantics = [#tpu.dimension_semantics<parallel>, #tpu.dimension_semantics<arbitrary>], iteration_bounds = array<i64: 2, 4>, scalar_prefetch = 0 : i64, scratch_operands = 1 : i64, tpu.core_type = #tpu.core_type<tc>, window_params = [{transform_indices = @transform_0, window_bounds = array<i64: 128, 32>}, {transform_indices = @transform_1, window_bounds = array<i64: 128, 1>}, {transform_indices = @transform_2, window_bounds = array<i64: 1, 8, 128>}]} {
    %c0_i32 = arith.constant 0 : i32
    %0 = arith.cmpi eq, %arg1, %c0_i32 : i32
    %1 = arith.extui %0 : i1 to i32
    %c0_i32_0 = arith.constant 0 : i32
    %2 = arith.cmpi ne, %1, %c0_i32_0 : i32
    scf.if %2 {
      %cst_18 = arith.constant 0.000000e+00 : f32
      %52 = vector.broadcast %cst_18 : f32 to vector<128x1xf32>
      %c0_19 = arith.constant 0 : index
      %c0_20 = arith.constant 0 : index
      %53 = vector.load %arg5[%c0_19, %c0_20] : memref<128x1xf32, #tpu.memory_space<vmem>>, vector<128x1xf32>
      tpu.vector_store %arg5[%c0_19, %c0_20], %52 {strides = array<i32>} : memref<128x1xf32, #tpu.memory_space<vmem>>, vector<128x1xf32>,
    } else {
    }
    %c0 = arith.constant 0 : index
    %c0_1 = arith.constant 0 : index
    %3 = vector.load %arg2[%c0, %c0_1] : memref<128x32xf32, #tpu.memory_space<vmem>>, vector<128x32xf32>
    %c0_2 = arith.constant 0 : index
    %c0_3 = arith.constant 0 : index
    %4 = vector.load %arg3[%c0_2, %c0_3] : memref<128x1xi32, #tpu.memory_space<vmem>>, vector<128x1xi32>
    %5 = tpu.iota {dimensions = array<i32: 0>} : vector<128x1xi32>
    %c4_i32 = arith.constant 4 : i32
    %6 = arith.muli %arg0, %c4_i32 : i32
    %7 = arith.addi %6, %arg1 : i32
    %c128_i32 = arith.constant 128 : i32
    %8 = arith.muli %7, %c128_i32 : i32
    %9 = vector.broadcast %8 : i32 to vector<128x1xi32>
    %10 = arith.addi %9, %5 : vector<128x1xi32>
    %c1000_i32 = arith.constant 1000 : i32
    %11 = vector.broadcast %c1000_i32 : i32 to vector<128x1xi32>
    %12 = arith.cmpi slt, %10, %11 : vector<128x1xi32>
    %cst = arith.constant 0.000000e+00 : f32
    %13 = vector.shape_cast %12 : vector<128x1xi1> to vector<128x1xi1>
    %14 = vector.broadcast %13 : vector<128x1xi1> to vector<128x32xi1>
    %15 = vector.broadcast %cst : f32 to vector<128x32xf32>
    %16 = arith.select %14, %3, %15 : vector<128x32xi1>, vector<128x32xf32>
    %cst_4 = arith.constant dense<0xFF800000> : vector<128xf32>
    %17 = vector.multi_reduction <maximumf>, %16, %cst_4 [1] : vector<128x32xf32> to vector<128xf32>
    %18 = vector.shape_cast %17 : vector<128xf32> to vector<128x1xf32>
    %19 = vector.broadcast %18 : vector<128x1xf32> to vector<128x32xf32>
    %20 = arith.subf %16, %19 : vector<128x32xf32>
    %21 = math.exp %20 : vector<128x32xf32>
    %cst_5 = arith.constant dense<0.000000e+00> : vector<128xf32>
    %22 = vector.multi_reduction <add>, %21, %cst_5 [1] : vector<128x32xf32> to vector<128xf32>
    %23 = vector.shape_cast %22 : vector<128xf32> to vector<128x1xf32>
    %24 = math.log %23 : vector<128x1xf32>
    %25 = arith.addf %18, %24 : vector<128x1xf32>
    %26 = tpu.iota {dimensions = array<i32: 1>} : vector<128x32xi32>
    %27 = vector.broadcast %4 : vector<128x1xi32> to vector<128x32xi32>
    %28 = arith.cmpi eq, %26, %27 : vector<128x32xi32>
    %cst_6 = arith.constant 0.000000e+00 : f32
    %29 = vector.broadcast %cst_6 : f32 to vector<128x32xf32>
    %30 = arith.select %28, %16, %29 : vector<128x32xi1>, vector<128x32xf32>
    %cst_7 = arith.constant dense<0.000000e+00> : vector<128xf32>
    %31 = vector.multi_reduction <add>, %30, %cst_7 [1] : vector<128x32xf32> to vector<128xf32>
    %32 = vector.shape_cast %31 : vector<128xf32> to vector<128x1xf32>
    %cst_8 = arith.constant dense<0.000000e+00> : vector<128xf32>
    %33 = vector.multi_reduction <add>, %16, %cst_8 [1] : vector<128x32xf32> to vector<128xf32>
    %34 = vector.shape_cast %33 : vector<128xf32> to vector<128x1xf32>
    %cst_9 = arith.constant 3.125000e-02 : f32
    %35 = vector.broadcast %cst_9 : f32 to vector<128x1xf32>
    %36 = arith.mulf %34, %35 : vector<128x1xf32>
    %37 = arith.subf %25, %32 : vector<128x1xf32>
    %cst_10 = arith.constant 0.949999988 : f32
    %38 = vector.broadcast %cst_10 : f32 to vector<128x1xf32>
    %39 = arith.mulf %38, %37 : vector<128x1xf32>
    %40 = arith.subf %25, %36 : vector<128x1xf32>
    %cst_11 = arith.constant 5.000000e-02 : f32
    %41 = vector.broadcast %cst_11 : f32 to vector<128x1xf32>
    %42 = arith.mulf %41, %40 : vector<128x1xf32>
    %43 = arith.addf %39, %42 : vector<128x1xf32>
    %cst_12 = arith.constant 0.000000e+00 : f32
    %44 = vector.broadcast %cst_12 : f32 to vector<128x1xf32>
    %45 = arith.select %12, %43, %44 : vector<128x1xi1>, vector<128x1xf32>
    %c0_13 = arith.constant 0 : index
    %c0_14 = arith.constant 0 : index
    %46 = vector.load %arg5[%c0_13, %c0_14] : memref<128x1xf32, #tpu.memory_space<vmem>>, vector<128x1xf32>
    %47 = arith.addf %46, %45 : vector<128x1xf32>
    %c0_15 = arith.constant 0 : index
    %c0_16 = arith.constant 0 : index
    %48 = vector.load %arg5[%c0_15, %c0_16] : memref<128x1xf32, #tpu.memory_space<vmem>>, vector<128x1xf32>
    tpu.vector_store %arg5[%c0_15, %c0_16], %47 {strides = array<i32>} : memref<128x1xf32, #tpu.memory_space<vmem>>, vector<128x1xf32>,
    %c3_i32 = arith.constant 3 : i32
    %49 = arith.cmpi eq, %arg1, %c3_i32 : i32
    %50 = arith.extui %49 : i1 to i32
    %c0_i32_17 = arith.constant 0 : i32
    %51 = arith.cmpi ne, %50, %c0_i32_17 : i32
    scf.if %51 {
      %c0_18 = arith.constant 0 : index
      %c0_19 = arith.constant 0 : index
      %52 = vector.load %arg5[%c0_18, %c0_19] : memref<128x1xf32, #tpu.memory_space<vmem>>, vector<128x1xf32>
      %53 = vector.shape_cast %52 : vector<128x1xf32> to vector<1x128x1xf32>
      %cst_20 = arith.constant dense<0.000000e+00> : vector<1xf32>
      %54 = vector.multi_reduction <add>, %53, %cst_20 [1, 2] : vector<1x128x1xf32> to vector<1xf32>
      %55 = vector.shape_cast %54 : vector<1xf32> to vector<1x1x1xf32>
      %56 = vector.extract %55[0, 0, 0] : f32 from vector<1x1x1xf32>
      %57 = vector.broadcast %56 : f32 to vector<1x8x128xf32>
      %c0_21 = arith.constant 0 : index
      %c0_22 = arith.constant 0 : index
      %c0_23 = arith.constant 0 : index
      %58 = vector.load %arg4[%c0_21, %c0_22, %c0_23] : memref<1x8x128xf32, #tpu.memory_space<vmem>>, vector<1x8x128xf32>
      tpu.vector_store %arg4[%c0_21, %c0_22, %c0_23], %57 {strides = array<i32>} : memref<1x8x128xf32, #tpu.memory_space<vmem>>, vector<1x8x128xf32>,
    } else {
    }
    return
  }
  func.func @transform_0(%arg0: i32, %arg1: i32) -> (i32, i32) {
    %c4_i32 = arith.constant 4 : i32
    %0 = arith.muli %arg0, %c4_i32 : i32
    %1 = arith.addi %0, %arg1 : i32
    %c7_i32 = arith.constant 7 : i32
    %2 = arith.minsi %1, %c7_i32 : i32
    %c0_i32 = arith.constant 0 : i32
    %c0_i32_0 = arith.constant 0 : i32
    return %2, %c0_i32 : i32, i32
  }
  func.func @transform_1(%arg0: i32, %arg1: i32) -> (i32, i32) {
    %c4_i32 = arith.constant 4 : i32
    %0 = arith.muli %arg0, %c4_i32 : i32
    %1 = arith.addi %0, %arg1 : i32
    %c7_i32 = arith.constant 7 : i32
    %2 = arith.minsi %1, %c7_i32 : i32
    %c0_i32 = arith.constant 0 : i32
    %c0_i32_0 = arith.constant 0 : i32
    return %2, %c0_i32 : i32, i32
  }
  func.func @transform_2(%arg0: i32, %arg1: i32) -> (i32, i32, i32) {
    %c0_i32 = arith.constant 0 : i32
    %c0_i32_0 = arith.constant 0 : i32
    %c0_i32_1 = arith.constant 0 : i32
    return %arg0, %c0_i32, %c0_i32_0 : i32, i32, i32
  }
}

</mosaic_0001>

<llo_original>
// kernel: tpu_custom_call.1
$region0: #{tpu_custom_call.1}
  #allocation0 [shape = 'u32[]', space=smem, size = 0x4, offset = 0x4, fixed_abs, tag = 'smem constant byte address 0x4 - core index']
  #allocation1 [shape = 'u32[144,128]{1,0:T(1,128)}', space=vmem, size = 0x12000, scoped, tag = 'internal scratch']
  #allocation2 [shape = 'f32[128,1]{1,0:T(8,128)}', space=vmem, size = 0x10000, scoped, tag = 'scratch operand']
  %s0 = inlined_call_operand.vmem [shape: f32[1000,32], index: 0, kind: input, shape index: {}]
  %s1 = inlined_call_operand.vmem [shape: s32[1000,1], index: 1, kind: input, shape index: {}]
  %s2 = inlined_call_operand.hbm [shape: f32[2,8,128], index: 2, kind: output, shape index: {}]
  %s3 = sld [smem:[#allocation0]]
  $region49: #{tpu_custom_call.1} parent=0
    _
  %s5 = ssub.s32 1, %s3
  %s6 = scalar_select 0, %s5, %s3
  $region1: #{tpu_custom_call.1} parent=0
    #allocation3 [shape = 'u8[8192]{0}', space=vmem, size = 0x2000, scoped, tag = 'output window, operand 0']
    #allocation4 [shape = 's32[2]{0}', space=sflag, size = 0x8, scoped, tag = 'scoped memory for tpu_custom_call.1']
    %7 = vsyncpa [#allocation4], 0
    %s8 = scalar_lea.sflag [#allocation4], 1
    %9 = vsyncpa %s8, 0
    loop: start=0, step=1, limit=10
    $region2: #{tpu_custom_call.1} parent=1 // loop_pre_header
      _
    $region3: #{tpu_custom_call.1} parent=1 // loop_header
      %s11 = sphi 0, %s15
      %p12 = scmp.ge.s32.totalorder %s11, 10
      %s18 = sphi 0, %s30
      %s19 = sphi 0, %s26
      %s20 = sphi 0, %s18
      %s21 = sphi 0, %s19
      %s22 = sphi 0, %s20
      %s23 = sphi 0, %s21
      %s41 = sphi 0, %s43
      %s44 = sphi 0, %s41
      %s45 = sphi 0, %s44
      %s61 = sphi 0, %s45
      %s75 = sphi 0, %s77
      %s78 = sphi 0, %s75
      %s79 = sphi 0, %s78
      %s95 = sphi 0, %s79
      %s101 = sphi 0, %s103
      %s104 = sphi 0, %s101
      %s105 = sphi 0, %s104
      %s121 = sphi 0, %s105
    $region4: #{tpu_custom_call.1} parent=1 // loop_header_branch
      %14 = sbr.rel (%p12) target = $region8
    $region5: #{tpu_custom_call.1} parent=1 // loop_body
      %s16 = ssub.s32 %s11, 1
      %s17 = ssub.s32 %s11, 2
      %s24 = sadd.s32 1, %s19
      %p25 = scmp.ge.s32.totalorder %s24, 4
      %s26 = scalar_select %p25, 0, %s24
      %s27 = sadd.s32 1, %s18
      %s28 = scalar_select %p25, %s27, %s18
      %p29 = scmp.ge.s32.totalorder %s28, 2
      %s30 = scalar_select %p29, 0, %s28
      %s31 = smul.u32 %s18, 4
      %s32 = sadd.s32 %s31, %s19
      %p33 = scmp.lt.s32.totalorder %s32, 7
      %s34 = scalar_select %p33, %s32, 7
      %s35 = smul.u32 %s30, 4
      %s36 = sadd.s32 %s35, %s26
      %p37 = scmp.lt.s32.totalorder %s36, 7
      %s38 = scalar_select %p37, %s36, 7
      %s39 = ssub.s32 %s34, %s38
      %p40 = scmp.eq.s32.totalorder %s39, 0
      %s42 = sadd.s32 %s41, 1
      %s43 = scalar_select %p40, %s41, %s42
      %p46 = pneg %p40
      %p47 = scmp.eq.s32.totalorder %s11, 7
      %p48 = por %p46, %p47
      %p49 = scmp.ne.s32.totalorder %s41, %s44
      %p50 = scmp.eq.s32.totalorder %s11, 0
      %p51 = por %p49, %p50
      %p52 = scmp.ne.s32.totalorder %s41, %s44
      %p53 = scmp.eq.s32.totalorder %s16, 7
      %p54 = por %p52, %p53
      %p55 = scmp.ne.s32.totalorder %s44, %s45
      %p56 = scmp.eq.s32.totalorder %s16, 0
      %p57 = por %p55, %p56
      %p58 = scmp.ne.s32.totalorder %s44, %s45
      %p59 = scmp.eq.s32.totalorder %s17, 7
      %p60 = por %p58, %p59
      %p62 = scmp.ne.s32.totalorder %s45, %s61
      %p63 = scmp.eq.s32.totalorder %s17, 0
      %p64 = por %p62, %p63
      %s65 = smul.u32 %s18, 4
      %s66 = sadd.s32 %s65, %s19
      %p67 = scmp.lt.s32.totalorder %s66, 7
      %s68 = scalar_select %p67, %s66, 7
      %s69 = smul.u32 %s30, 4
      %s70 = sadd.s32 %s69, %s26
      %p71 = scmp.lt.s32.totalorder %s70, 7
      %s72 = scalar_select %p71, %s70, 7
      %s73 = ssub.s32 %s68, %s72
      %p74 = scmp.eq.s32.totalorder %s73, 0
      %s76 = sadd.s32 %s75, 1
      %s77 = scalar_select %p74, %s75, %s76
      %p80 = pneg %p74
      %p81 = scmp.eq.s32.totalorder %s11, 7
      %p82 = por %p80, %p81
      %p83 = scmp.ne.s32.totalorder %s75, %s78
      %p84 = scmp.eq.s32.totalorder %s11, 0
      %p85 = por %p83, %p84
      %p86 = scmp.ne.s32.totalorder %s75, %s78
      %p87 = scmp.eq.s32.totalorder %s16, 7
      %p88 = por %p86, %p87
      %p89 = scmp.ne.s32.totalorder %s78, %s79
      %p90 = scmp.eq.s32.totalorder %s16, 0
      %p91 = por %p89, %p90
      %p92 = scmp.ne.s32.totalorder %s78, %s79
      %p93 = scmp.eq.s32.totalorder %s17, 7
      %p94 = por %p92, %p93
      %p96 = scmp.ne.s32.totalorder %s79, %s95
      %p97 = scmp.eq.s32.totalorder %s17, 0
      %p98 = por %p96, %p97
      %s99 = ssub.s32 %s18, %s30
      %p100 = scmp.eq.s32.totalorder %s99, 0
      %s102 = sadd.s32 %s101, 1
      %s103 = scalar_select %p100, %s101, %s102
      %p106 = pneg %p100
      %p107 = scmp.eq.s32.totalorder %s11, 7
      %p108 = por %p106, %p107
      %p109 = scmp.ne.s32.totalorder %s101, %s104
      %p110 = scmp.eq.s32.totalorder %s11, 0
      %p111 = por %p109, %p110
      %p112 = scmp.ne.s32.totalorder %s101, %s104
      %p113 = scmp.eq.s32.totalorder %s16, 7
      %p114 = por %p112, %p113
      %p115 = scmp.ne.s32.totalorder %s104, %s105
      %p116 = scmp.eq.s32.totalorder %s16, 0
      %p117 = por %p115, %p116
      %p118 = scmp.ne.s32.totalorder %s104, %s105
      %p119 = scmp.eq.s32.totalorder %s17, 7
      %p120 = por %p118, %p119
      %p122 = scmp.ne.s32.totalorder %s105, %s121
      %p123 = scmp.eq.s32.totalorder %s17, 0
      %p124 = por %p122, %p123
      %p125 = scmp.le.s32.totalorder 1, %s11
      %p126 = scmp.lt.s32.totalorder %s11, 9
      %p127 = pnand %p125, %p126
      %p128 = pneg %p127
      // Predicated region
      $region9: #{tpu_custom_call.1} parent=5 // pred_check
        _
      $region10: #{tpu_custom_call.1} parent=5 // pred_check_branch
        %130 = sbr.rel (%p127) target = $region12
      $region11: #{tpu_custom_call.1} parent=5 // pred_region
        %s131 = ssub.s32 %s11, 1
      $region12: #{tpu_custom_call.1} parent=5 // pred_fallthru
        _
      %p132 = scmp.lt.s32.totalorder %s11, 8
      // Predicated region
      $region13: #{tpu_custom_call.1} parent=5 // pred_check
        %p133 = pneg %p132
      $region14: #{tpu_custom_call.1} parent=5 // pred_check_branch
        %135 = sbr.rel (%p133) target = $region16
      $region15: #{tpu_custom_call.1} parent=5 // pred_region
        // Predicated region
        $region17: #{tpu_custom_call.1} parent=15 // pred_check
          %p136 = pneg %p51
        $region18: #{tpu_custom_call.1} parent=15 // pred_check_branch
          %138 = sbr.rel (%p136) target = $region20
        $region19: #{tpu_custom_call.1} parent=15 // pred_region
          %s139 = smul.u32 %s18, 4
          %s140 = sadd.s32 %s139, %s19
          %p141 = scmp.lt.s32.totalorder %s140, 7
          %s142 = scalar_select %p141, %s140, 7
          %s143 = smul.u32 16, %s142
          %s144 = ssub.s32 125, %s143
          %p145 = scmp.lt.s32.totalorder %s144, 16
          %s146 = scalar_select %p145, %s144, 16
          %s147 = smul.u32 128, %s146
          %p148 = scmp.lt.s32.totalorder %s143, 124
          %s149 = scalar_select %p148, %s143, 124
          %s150 = smul.addr %s149, 8
          %s151 = scalar_lea.vmem %s0, %s150
          %s152 = smul.u32 %s18, 4
          %s153 = sadd.s32 %s152, %s19
          %p154 = scmp.lt.s32.totalorder %s153, 7
          %s155 = scalar_select %p154, %s153, 7
          %s156 = smul.u32 16, %s155
          %s157 = ssub.s32 125, %s156
          %p158 = scmp.lt.s32.totalorder %s157, 16
          %s159 = scalar_select %p158, %s157, 16
          %s160 = smul.u32 128, %s159
        $region20: #{tpu_custom_call.1} parent=15 // pred_fallthru
          _
        // Predicated region
        $region21: #{tpu_custom_call.1} parent=15 // pred_check
          %p161 = pneg %p85
        $region22: #{tpu_custom_call.1} parent=15 // pred_check_branch
          %163 = sbr.rel (%p161) target = $region24
        $region23: #{tpu_custom_call.1} parent=15 // pred_region
          %s164 = smul.u32 %s18, 4
          %s165 = sadd.s32 %s164, %s19
          %p166 = scmp.lt.s32.totalorder %s165, 7
          %s167 = scalar_select %p166, %s165, 7
          %s168 = smul.u32 16, %s167
          %s169 = ssub.s32 125, %s168
          %p170 = scmp.lt.s32.totalorder %s169, 16
          %s171 = scalar_select %p170, %s169, 16
          %s172 = smul.u32 128, %s171
          %p173 = scmp.lt.s32.totalorder %s168, 124
          %s174 = scalar_select %p173, %s168, 124
          %s175 = smul.addr %s174, 8
          %s176 = scalar_lea.vmem %s1, %s175
          %s177 = smul.u32 %s18, 4
          %s178 = sadd.s32 %s177, %s19
          %p179 = scmp.lt.s32.totalorder %s178, 7
          %s180 = scalar_select %p179, %s178, 7
          %s181 = smul.u32 16, %s180
          %s182 = ssub.s32 125, %s181
          %p183 = scmp.lt.s32.totalorder %s182, 16
          %s184 = scalar_select %p183, %s182, 16
          %s185 = smul.u32 128, %s184
        $region24: #{tpu_custom_call.1} parent=15 // pred_fallthru
          _
      $region16: #{tpu_custom_call.1} parent=5 // pred_fallthru
        _
      %p186 = scmp.le.s32.totalorder 1, %s11
      %p187 = scmp.lt.s32.totalorder %s11, 9
      %p188 = pnand %p186, %p187
      %p189 = pneg %p188
      // Predicated region
      $region25: #{tpu_custom_call.1} parent=5 // pred_check
        _
      $region26: #{tpu_custom_call.1} parent=5 // pred_check_branch
        %191 = sbr.rel (%p188) target = $region28
      $region27: #{tpu_custom_call.1} parent=5 // pred_region
        %s192 = ssub.s32 %s11, 1
        %s193 = smul.u32 %s20, 4
        %s194 = sadd.s32 %s193, %s21
        %p195 = scmp.lt.s32.totalorder %s194, 7
        %s196 = scalar_select %p195, %s194, 7
        %s197 = smul.u32 16, %s196
        %s198 = ssub.s32 125, %s197
        %p199 = scmp.lt.s32.totalorder %s198, 16
        %s200 = scalar_select %p199, %s198, 16
        %s201 = smul.u32 128, %s200
        %p202 = scmp.lt.s32.totalorder %s197, 124
        %s203 = scalar_select %p202, %s197, 124
        %s204 = smul.addr %s203, 8
        %s205 = scalar_lea.vmem %s0, %s204
        %p206 = pneg %p57
        %p207 = pneg %p54
        %s208 = smul.u32 %s20, 4
        %s209 = sadd.s32 %s208, %s21
        %p210 = scmp.lt.s32.totalorder %s209, 7
        %s211 = scalar_select %p210, %s209, 7
        %s212 = smul.u32 16, %s211
        %s213 = ssub.s32 125, %s212
        %p214 = scmp.lt.s32.totalorder %s213, 16
        %s215 = scalar_select %p214, %s213, 16
        %s216 = smul.u32 128, %s215
        %p217 = scmp.lt.s32.totalorder %s212, 124
        %s218 = scalar_select %p217, %s212, 124
        %s219 = smul.addr %s218, 8
        %s220 = scalar_lea.vmem %s1, %s219
        %p221 = pneg %p91
        %p222 = pneg %p88
        %p223 = pneg %p117
        %p224 = pneg %p114
        %s225 = sand.u32 %s104, 1
        %s226 = scalar_lea.sflag [#allocation4], %s225
        %s227 = sand.u32 %s104, 1
        %s228 = smul.addr %s227, 8
        %s229 = scalar_lea.vmem [#allocation3], %s228
        %s230 = smul.u32 %s20, 4
        %s231 = sadd.s32 %s230, %s21
        %p232 = scmp.lt.s32.totalorder %s231, 7
        %s233 = scalar_select %p232, %s231, 7
        %s234 = smul.u32 16, %s233
        %s235 = ssub.s32 125, %s234
        %p236 = scmp.lt.s32.totalorder %s235, 16
        %s237 = scalar_select %p236, %s235, 16
        %s238 = smul.u32 128, %s237
        %p239 = scmp.lt.s32.totalorder %s234, 124
        %s240 = scalar_select %p239, %s234, 124
        %s241 = smul.addr %s240, 8
        %s242 = scalar_lea.vmem %s0, %s241
        %s243 = smul.u32 %s20, 4
        %s244 = sadd.s32 %s243, %s21
        %p245 = scmp.lt.s32.totalorder %s244, 7
        %s246 = scalar_select %p245, %s244, 7
        %s247 = smul.u32 16, %s246
        %s248 = ssub.s32 125, %s247
        %p249 = scmp.lt.s32.totalorder %s248, 16
        %s250 = scalar_select %p249, %s248, 16
        %s251 = smul.u32 128, %s250
        %s252 = smul.u32 %s20, 4
        %s253 = sadd.s32 %s252, %s21
        %p254 = scmp.lt.s32.totalorder %s253, 7
        %s255 = scalar_select %p254, %s253, 7
        %s256 = smul.u32 16, %s255
        %s257 = ssub.s32 125, %s256
        %p258 = scmp.lt.s32.totalorder %s257, 16
        %s259 = scalar_select %p258, %s257, 16
        %s260 = smul.u32 128, %s259
        %p261 = scmp.lt.s32.totalorder %s256, 124
        %s262 = scalar_select %p261, %s256, 124
        %s263 = smul.addr %s262, 8
        %s264 = scalar_lea.vmem %s1, %s263
        %s265 = smul.u32 %s20, 4
        %s266 = sadd.s32 %s265, %s21
        %p267 = scmp.lt.s32.totalorder %s266, 7
        %s268 = scalar_select %p267, %s266, 7
        %s269 = smul.u32 16, %s268
        %s270 = ssub.s32 125, %s269
        %p271 = scmp.lt.s32.totalorder %s270, 16
        %s272 = scalar_select %p271, %s270, 16
        %s273 = smul.u32 128, %s272
        %p274 = scmp.eq.s32.totalorder %s21, 0
        // Predicated region
        $region29: #{tpu_custom_call.1} parent=27 // pred_check
          %p275 = pneg %p274
        $region30: #{tpu_custom_call.1} parent=27 // pred_check_branch
          %277 = sbr.rel (%p275) target = $region32
        $region31: #{tpu_custom_call.1} parent=27 // pred_region
          %vm278 = vcmask 7168
          %279 = vst.msk [vmem:[#allocation2] sm:$0xff] %vm278, 0.0
          %280 = vst.msk [vmem:[#allocation2 + $0x8] sm:$0xff] %vm278, 0.0
          %281 = vst.msk [vmem:[#allocation2 + $0x10] sm:$0xff] %vm278, 0.0
          %282 = vst.msk [vmem:[#allocation2 + $0x18] sm:$0xff] %vm278, 0.0
          %283 = vst.msk [vmem:[#allocation2 + $0x20] sm:$0xff] %vm278, 0.0
          %284 = vst.msk [vmem:[#allocation2 + $0x28] sm:$0xff] %vm278, 0.0
          %285 = vst.msk [vmem:[#allocation2 + $0x30] sm:$0xff] %vm278, 0.0
          %286 = vst.msk [vmem:[#allocation2 + $0x38] sm:$0xff] %vm278, 0.0
          %287 = vst.msk [vmem:[#allocation2 + $0x40] sm:$0xff] %vm278, 0.0
          %288 = vst.msk [vmem:[#allocation2 + $0x48] sm:$0xff] %vm278, 0.0
          %289 = vst.msk [vmem:[#allocation2 + $0x50] sm:$0xff] %vm278, 0.0
          %290 = vst.msk [vmem:[#allocation2 + $0x58] sm:$0xff] %vm278, 0.0
          %291 = vst.msk [vmem:[#allocation2 + $0x60] sm:$0xff] %vm278, 0.0
          %292 = vst.msk [vmem:[#allocation2 + $0x68] sm:$0xff] %vm278, 0.0
          %293 = vst.msk [vmem:[#allocation2 + $0x70] sm:$0xff] %vm278, 0.0
          %294 = vst.msk [vmem:[#allocation2 + $0x78] sm:$0xff] %vm278, 0.0
        $region32: #{tpu_custom_call.1} parent=27 // pred_fallthru
          _
        %v295 = vld [vmem:[%s242] sm:$0xff]
        %v296 = vld [vmem:[%s242 + $0x8] sm:$0xff]
        %v297 = vld [vmem:[%s242 + $0x10] sm:$0xff]
        %v298 = vld [vmem:[%s242 + $0x18] sm:$0xff]
        %v299 = vld [vmem:[%s242 + $0x20] sm:$0xff]
        %v300 = vld [vmem:[%s242 + $0x28] sm:$0xff]
        %v301 = vld [vmem:[%s242 + $0x30] sm:$0xff]
        %v302 = vld [vmem:[%s242 + $0x38] sm:$0xff]
        %v303 = vld [vmem:[%s242 + $0x40] sm:$0xff]
        %v304 = vld [vmem:[%s242 + $0x48] sm:$0xff]
        %v305 = vld [vmem:[%s242 + $0x50] sm:$0xff]
        %v306 = vld [vmem:[%s242 + $0x58] sm:$0xff]
        %v307 = vld [vmem:[%s242 + $0x60] sm:$0xff]
        %v308 = vld [vmem:[%s242 + $0x68] sm:$0xff]
        %v309 = vld [vmem:[%s242 + $0x70] sm:$0xff]
        %v310 = vld [vmem:[%s242 + $0x78] sm:$0xff]
        %v311 = vld [vmem:[%s264] sm:$0xff]
        %v312 = vld [vmem:[%s264 + $0x8] sm:$0xff]
        %v313 = vld [vmem:[%s264 + $0x10] sm:$0xff]
        %v314 = vld [vmem:[%s264 + $0x18] sm:$0xff]
        %v315 = vld [vmem:[%s264 + $0x20] sm:$0xff]
        %v316 = vld [vmem:[%s264 + $0x28] sm:$0xff]
        %v317 = vld [vmem:[%s264 + $0x30] sm:$0xff]
        %v318 = vld [vmem:[%s264 + $0x38] sm:$0xff]
        %v319 = vld [vmem:[%s264 + $0x40] sm:$0xff]
        %v320 = vld [vmem:[%s264 + $0x48] sm:$0xff]
        %v321 = vld [vmem:[%s264 + $0x50] sm:$0xff]
        %v322 = vld [vmem:[%s264 + $0x58] sm:$0xff]
        %v323 = vld [vmem:[%s264 + $0x60] sm:$0xff]
        %v324 = vld [vmem:[%s264 + $0x68] sm:$0xff]
        %v325 = vld [vmem:[%s264 + $0x70] sm:$0xff]
        %v326 = vld [vmem:[%s264 + $0x78] sm:$0xff]
        %v327 = vlaneseq
        %v328 = vshrl.u32 %v327, 7
        %v329 = vadd.s32 %v328, 8
        %v330 = vadd.s32 %v328, 16
        %v331 = vadd.s32 %v328, 24
        %v332 = vadd.s32 %v328, 32
        %v333 = vadd.s32 %v328, 40
        %v334 = vadd.s32 %v328, 48
        %v335 = vadd.s32 %v328, 56
        %v336 = vadd.s32 %v328, 64
        %v337 = vadd.s32 %v328, 72
        %v338 = vadd.s32 %v328, 80
        %v339 = vadd.s32 %v328, 88
        %v340 = vadd.s32 %v328, 96
        %v341 = vadd.s32 %v328, 104
        %v342 = vadd.s32 %v328, 112
        %v343 = vadd.s32 %v328, 120
        %s344 = smul.u32 %s20, 4
        %s345 = sadd.s32 %s344, %s21
        %s346 = smul.u32 %s345, 128
        %v347 = vstv %s346
        %v348 = vadd.s32 %v347, %v328
        %v349 = vadd.s32 %v347, %v329
        %v350 = vadd.s32 %v347, %v330
        %v351 = vadd.s32 %v347, %v331
        %v352 = vadd.s32 %v347, %v332
        %v353 = vadd.s32 %v347, %v333
        %v354 = vadd.s32 %v347, %v334
        %v355 = vadd.s32 %v347, %v335
        %v356 = vadd.s32 %v347, %v336
        %v357 = vadd.s32 %v347, %v337
        %v358 = vadd.s32 %v347, %v338
        %v359 = vadd.s32 %v347, %v339
        %v360 = vadd.s32 %v347, %v340
        %v361 = vadd.s32 %v347, %v341
        %v362 = vadd.s32 %v347, %v342
        %v363 = vadd.s32 %v347, %v343
        %vm364 = vcmp.lt.s32.totalorder %v348, 1000
        %vm365 = vcmp.lt.s32.totalorder %v349, 1000
        %vm366 = vcmp.lt.s32.totalorder %v350, 1000
        %vm367 = vcmp.lt.s32.totalorder %v351, 1000
        %vm368 = vcmp.lt.s32.totalorder %v352, 1000
        %vm369 = vcmp.lt.s32.totalorder %v353, 1000
        %vm370 = vcmp.lt.s32.totalorder %v354, 1000
        %vm371 = vcmp.lt.s32.totalorder %v355, 1000
        %vm372 = vcmp.lt.s32.totalorder %v356, 1000
        %vm373 = vcmp.lt.s32.totalorder %v357, 1000
        %vm374 = vcmp.lt.s32.totalorder %v358, 1000
        %vm375 = vcmp.lt.s32.totalorder %v359, 1000
        %vm376 = vcmp.lt.s32.totalorder %v360, 1000
        %vm377 = vcmp.lt.s32.totalorder %v361, 1000
        %vm378 = vcmp.lt.s32.totalorder %v362, 1000
        %vm379 = vcmp.lt.s32.totalorder %v363, 1000
        %v380 = vsel %vm364, 1, 0
        %v381 = vsel %vm365, 1, 0
        %v382 = vsel %vm366, 1, 0
        %v383 = vsel %vm367, 1, 0
        %v384 = vsel %vm368, 1, 0
        %v385 = vsel %vm369, 1, 0
        %v386 = vsel %vm370, 1, 0
        %v387 = vsel %vm371, 1, 0
        %v388 = vsel %vm372, 1, 0
        %v389 = vsel %vm373, 1, 0
        %v390 = vsel %vm374, 1, 0
        %v391 = vsel %vm375, 1, 0
        %v392 = vsel %vm376, 1, 0
        %v393 = vsel %vm377, 1, 0
        %v394 = vsel %vm378, 1, 0
        %v395 = vsel %vm379, 1, 0
        %vm396 = vcmp.eq.s32.totalorder %v380, 1
        %vm397 = vcmp.eq.s32.totalorder %v381, 1
        %vm398 = vcmp.eq.s32.totalorder %v382, 1
        %vm399 = vcmp.eq.s32.totalorder %v383, 1
        %vm400 = vcmp.eq.s32.totalorder %v384, 1
        %vm401 = vcmp.eq.s32.totalorder %v385, 1
        %vm402 = vcmp.eq.s32.totalorder %v386, 1
        %vm403 = vcmp.eq.s32.totalorder %v387, 1
        %vm404 = vcmp.eq.s32.totalorder %v388, 1
        %vm405 = vcmp.eq.s32.totalorder %v389, 1
        %vm406 = vcmp.eq.s32.totalorder %v390, 1
        %vm407 = vcmp.eq.s32.totalorder %v391, 1
        %vm408 = vcmp.eq.s32.totalorder %v392, 1
        %vm409 = vcmp.eq.s32.totalorder %v393, 1
        %vm410 = vcmp.eq.s32.totalorder %v394, 1
        %vm411 = vcmp.eq.s32.totalorder %v395, 1
        %v412 = vsel %vm396, %v295, 0.0
        %v413 = vsel %vm397, %v296, 0.0
        %v414 = vsel %vm398, %v297, 0.0
        %v415 = vsel %vm399, %v298, 0.0
        %v416 = vsel %vm400, %v299, 0.0
        %v417 = vsel %vm401, %v300, 0.0
        %v418 = vsel %vm402, %v301, 0.0
        %v419 = vsel %vm403, %v302, 0.0
        %v420 = vsel %vm404, %v303, 0.0
        %v421 = vsel %vm405, %v304, 0.0
        %v422 = vsel %vm406, %v305, 0.0
        %v423 = vsel %vm407, %v306, 0.0
        %v424 = vsel %vm408, %v307, 0.0
        %v425 = vsel %vm409, %v308, 0.0
        %v426 = vsel %vm410, %v309, 0.0
        %v427 = vsel %vm411, %v310, 0.0
        %vm428 = vcmask 261120
        %v429 = vsel %vm428, %v412, -inf
        %430 = vmax.xlane.f32.xlu0 %v429
        %v431 = vpop.xlane.xlu0 %430
        %v432 = vsel %vm428, %v413, -inf
        %433 = vmax.xlane.f32.xlu0 %v432
        %v434 = vpop.xlane.xlu0 %433
        %v435 = vsel %vm428, %v414, -inf
        %436 = vmax.xlane.f32.xlu0 %v435
        %v437 = vpop.xlane.xlu0 %436
        %v438 = vsel %vm428, %v415, -inf
        %439 = vmax.xlane.f32.xlu0 %v438
        %v440 = vpop.xlane.xlu0 %439
        %v441 = vsel %vm428, %v416, -inf
        %442 = vmax.xlane.f32.xlu0 %v441
        %v443 = vpop.xlane.xlu0 %442
        %v444 = vsel %vm428, %v417, -inf
        %445 = vmax.xlane.f32.xlu0 %v444
        %v446 = vpop.xlane.xlu0 %445
        %v447 = vsel %vm428, %v418, -inf
        %448 = vmax.xlane.f32.xlu0 %v447
        %v449 = vpop.xlane.xlu0 %448
        %v450 = vsel %vm428, %v419, -inf
        %451 = vmax.xlane.f32.xlu0 %v450
        %v452 = vpop.xlane.xlu0 %451
        %v453 = vsel %vm428, %v420, -inf
        %454 = vmax.xlane.f32.xlu0 %v453
        %v455 = vpop.xlane.xlu0 %454
        %v456 = vsel %vm428, %v421, -inf
        %457 = vmax.xlane.f32.xlu0 %v456
        %v458 = vpop.xlane.xlu0 %457
        %v459 = vsel %vm428, %v422, -inf
        %460 = vmax.xlane.f32.xlu0 %v459
        %v461 = vpop.xlane.xlu0 %460
        %v462 = vsel %vm428, %v423, -inf
        %463 = vmax.xlane.f32.xlu0 %v462
        %v464 = vpop.xlane.xlu0 %463
        %v465 = vsel %vm428, %v424, -inf
        %466 = vmax.xlane.f32.xlu0 %v465
        %v467 = vpop.xlane.xlu0 %466
        %v468 = vsel %vm428, %v425, -inf
        %469 = vmax.xlane.f32.xlu0 %v468
        %v470 = vpop.xlane.xlu0 %469
        %v471 = vsel %vm428, %v426, -inf
        %472 = vmax.xlane.f32.xlu0 %v471
        %v473 = vpop.xlane.xlu0 %472
        %v474 = vsel %vm428, %v427, -inf
        %475 = vmax.xlane.f32.xlu0 %v474
        %v476 = vpop.xlane.xlu0 %475
        %v477 = vsub.f32 %v412, %v431
        %v478 = vsub.f32 %v413, %v434
        %v479 = vsub.f32 %v414, %v437
        %v480 = vsub.f32 %v415, %v440
        %v481 = vsub.f32 %v416, %v443
        %v482 = vsub.f32 %v417, %v446
        %v483 = vsub.f32 %v418, %v449
        %v484 = vsub.f32 %v419, %v452
        %v485 = vsub.f32 %v420, %v455
        %v486 = vsub.f32 %v421, %v458
        %v487 = vsub.f32 %v422, %v461
        %v488 = vsub.f32 %v423, %v464
        %v489 = vsub.f32 %v424, %v467
        %v490 = vsub.f32 %v425, %v470
        %v491 = vsub.f32 %v426, %v473
        %v492 = vsub.f32 %v427, %v476
        %v493 = vmul.f32 %v477, 1.442695
        %v494 = vpow.pop %v493
        %v495 = vmul.f32 %v478, 1.442695
        %v496 = vpow.pop %v495
        %v497 = vmul.f32 %v479, 1.442695
        %v498 = vpow.pop %v497
        %v499 = vmul.f32 %v480, 1.442695
        %v500 = vpow.pop %v499
        %v501 = vmul.f32 %v481, 1.442695
        %v502 = vpow.pop %v501
        %v503 = vmul.f32 %v482, 1.442695
        %v504 = vpow.pop %v503
        %v505 = vmul.f32 %v483, 1.442695
        %v506 = vpow.pop %v505
        %v507 = vmul.f32 %v484, 1.442695
        %v508 = vpow.pop %v507
        %v509 = vmul.f32 %v485, 1.442695
        %v510 = vpow.pop %v509
        %v511 = vmul.f32 %v486, 1.442695
        %v512 = vpow.pop %v511
        %v513 = vmul.f32 %v487, 1.442695
        %v514 = vpow.pop %v513
        %v515 = vmul.f32 %v488, 1.442695
        %v516 = vpow.pop %v515
        %v517 = vmul.f32 %v489, 1.442695
        %v518 = vpow.pop %v517
        %v519 = vmul.f32 %v490, 1.442695
        %v520 = vpow.pop %v519
        %v521 = vmul.f32 %v491, 1.442695
        %v522 = vpow.pop %v521
        %v523 = vmul.f32 %v492, 1.442695
        %v524 = vpow.pop %v523
        %v525 = vsel %vm428, %v494, 0.0
        %526 = vadd.xlane.f32.xlu0 %v525
        %v527 = vpop.xlane.xlu0 %526
        %v528 = vsel %vm428, %v496, 0.0
        %529 = vadd.xlane.f32.xlu0 %v528
        %v530 = vpop.xlane.xlu0 %529
        %v531 = vsel %vm428, %v498, 0.0
        %532 = vadd.xlane.f32.xlu0 %v531
        %v533 = vpop.xlane.xlu0 %532
        %v534 = vsel %vm428, %v500, 0.0
        %535 = vadd.xlane.f32.xlu0 %v534
        %v536 = vpop.xlane.xlu0 %535
        %v537 = vsel %vm428, %v502, 0.0
        %538 = vadd.xlane.f32.xlu0 %v537
        %v539 = vpop.xlane.xlu0 %538
        %v540 = vsel %vm428, %v504, 0.0
        %541 = vadd.xlane.f32.xlu0 %v540
        %v542 = vpop.xlane.xlu0 %541
        %v543 = vsel %vm428, %v506, 0.0
        %544 = vadd.xlane.f32.xlu0 %v543
        %v545 = vpop.xlane.xlu0 %544
        %v546 = vsel %vm428, %v508, 0.0
        %547 = vadd.xlane.f32.xlu0 %v546
        %v548 = vpop.xlane.xlu0 %547
        %v549 = vsel %vm428, %v510, 0.0
        %550 = vadd.xlane.f32.xlu0 %v549
        %v551 = vpop.xlane.xlu0 %550
        %v552 = vsel %vm428, %v512, 0.0
        %553 = vadd.xlane.f32.xlu0 %v552
        %v554 = vpop.xlane.xlu0 %553
        %v555 = vsel %vm428, %v514, 0.0
        %556 = vadd.xlane.f32.xlu0 %v555
        %v557 = vpop.xlane.xlu0 %556
        %v558 = vsel %vm428, %v516, 0.0
        %559 = vadd.xlane.f32.xlu0 %v558
        %v560 = vpop.xlane.xlu0 %559
        %v561 = vsel %vm428, %v518, 0.0
        %562 = vadd.xlane.f32.xlu0 %v561
        %v563 = vpop.xlane.xlu0 %562
        %v564 = vsel %vm428, %v520, 0.0
        %565 = vadd.xlane.f32.xlu0 %v564
        %v566 = vpop.xlane.xlu0 %565
        %v567 = vsel %vm428, %v522, 0.0
        %568 = vadd.xlane.f32.xlu0 %v567
        %v569 = vpop.xlane.xlu0 %568
        %v570 = vsel %vm428, %v524, 0.0
        %571 = vadd.xlane.f32.xlu0 %v570
        %v572 = vpop.xlane.xlu0 %571
        %v573 = vlog2.pop %v527
        %v574 = vmul.f32 %v573, 0.6931472
        %v575 = vlog2.pop %v530
        %v576 = vmul.f32 %v575, 0.6931472
        %v577 = vlog2.pop %v533
        %v578 = vmul.f32 %v577, 0.6931472
        %v579 = vlog2.pop %v536
        %v580 = vmul.f32 %v579, 0.6931472
        %v581 = vlog2.pop %v539
        %v582 = vmul.f32 %v581, 0.6931472
        %v583 = vlog2.pop %v542
        %v584 = vmul.f32 %v583, 0.6931472
        %v585 = vlog2.pop %v545
        %v586 = vmul.f32 %v585, 0.6931472
        %v587 = vlog2.pop %v548
        %v588 = vmul.f32 %v587, 0.6931472
        %v589 = vlog2.pop %v551
        %v590 = vmul.f32 %v589, 0.6931472
        %v591 = vlog2.pop %v554
        %v592 = vmul.f32 %v591, 0.6931472
        %v593 = vlog2.pop %v557
        %v594 = vmul.f32 %v593, 0.6931472
        %v595 = vlog2.pop %v560
        %v596 = vmul.f32 %v595, 0.6931472
        %v597 = vlog2.pop %v563
        %v598 = vmul.f32 %v597, 0.6931472
        %v599 = vlog2.pop %v566
        %v600 = vmul.f32 %v599, 0.6931472
        %v601 = vlog2.pop %v569
        %v602 = vmul.f32 %v601, 0.6931472
        %v603 = vlog2.pop %v572
        %v604 = vmul.f32 %v603, 0.6931472
        %v605 = vadd.f32 %v431, %v574
        %v606 = vadd.f32 %v434, %v576
        %v607 = vadd.f32 %v437, %v578
        %v608 = vadd.f32 %v440, %v580
        %v609 = vadd.f32 %v443, %v582
        %v610 = vadd.f32 %v446, %v584
        %v611 = vadd.f32 %v449, %v586
        %v612 = vadd.f32 %v452, %v588
        %v613 = vadd.f32 %v455, %v590
        %v614 = vadd.f32 %v458, %v592
        %v615 = vadd.f32 %v461, %v594
        %v616 = vadd.f32 %v464, %v596
        %v617 = vadd.f32 %v467, %v598
        %v618 = vadd.f32 %v470, %v600
        %v619 = vadd.f32 %v473, %v602
        %v620 = vadd.f32 %v476, %v604
        %v621 = vlaneseq
        %v622 = vand.u32 %v621, 127
        %623 = vset.pattern.permute.xlu0 0
        %624 = vperm.xlu0 %623, %v311
        %v625 = vpop.permute.xlu0 %624
        %626 = vset.pattern.permute.xlu0 0
        %627 = vperm.xlu0 %626, %v312
        %v628 = vpop.permute.xlu0 %627
        %629 = vset.pattern.permute.xlu0 0
        %630 = vperm.xlu0 %629, %v313
        %v631 = vpop.permute.xlu0 %630
        %632 = vset.pattern.permute.xlu0 0
        %633 = vperm.xlu0 %632, %v314
        %v634 = vpop.permute.xlu0 %633
        %635 = vset.pattern.permute.xlu0 0
        %636 = vperm.xlu0 %635, %v315
        %v637 = vpop.permute.xlu0 %636
        %638 = vset.pattern.permute.xlu0 0
        %639 = vperm.xlu0 %638, %v316
        %v640 = vpop.permute.xlu0 %639
        %641 = vset.pattern.permute.xlu0 0
        %642 = vperm.xlu0 %641, %v317
        %v643 = vpop.permute.xlu0 %642
        %644 = vset.pattern.permute.xlu0 0
        %645 = vperm.xlu0 %644, %v318
        %v646 = vpop.permute.xlu0 %645
        %647 = vset.pattern.permute.xlu0 0
        %648 = vperm.xlu0 %647, %v319
        %v649 = vpop.permute.xlu0 %648
        %650 = vset.pattern.permute.xlu0 0
        %651 = vperm.xlu0 %650, %v320
        %v652 = vpop.permute.xlu0 %651
        %653 = vset.pattern.permute.xlu0 0
        %654 = vperm.xlu0 %653, %v321
        %v655 = vpop.permute.xlu0 %654
        %656 = vset.pattern.permute.xlu0 0
        %657 = vperm.xlu0 %656, %v322
        %v658 = vpop.permute.xlu0 %657
        %659 = vset.pattern.permute.xlu0 0
        %660 = vperm.xlu0 %659, %v323
        %v661 = vpop.permute.xlu0 %660
        %662 = vset.pattern.permute.xlu0 0
        %663 = vperm.xlu0 %662, %v324
        %v664 = vpop.permute.xlu0 %663
        %665 = vset.pattern.permute.xlu0 0
        %666 = vperm.xlu0 %665, %v325
        %v667 = vpop.permute.xlu0 %666
        %668 = vset.pattern.permute.xlu0 0
        %669 = vperm.xlu0 %668, %v326
        %v670 = vpop.permute.xlu0 %669
        %vm671 = vcmp.eq.s32.totalorder %v622, %v625
        %vm672 = vcmp.eq.s32.totalorder %v622, %v628
        %vm673 = vcmp.eq.s32.totalorder %v622, %v631
        %vm674 = vcmp.eq.s32.totalorder %v622, %v634
        %vm675 = vcmp.eq.s32.totalorder %v622, %v637
        %vm676 = vcmp.eq.s32.totalorder %v622, %v640
        %vm677 = vcmp.eq.s32.totalorder %v622, %v643
        %vm678 = vcmp.eq.s32.totalorder %v622, %v646
        %vm679 = vcmp.eq.s32.totalorder %v622, %v649
        %vm680 = vcmp.eq.s32.totalorder %v622, %v652
        %vm681 = vcmp.eq.s32.totalorder %v622, %v655
        %vm682 = vcmp.eq.s32.totalorder %v622, %v658
        %vm683 = vcmp.eq.s32.totalorder %v622, %v661
        %vm684 = vcmp.eq.s32.totalorder %v622, %v664
        %vm685 = vcmp.eq.s32.totalorder %v622, %v667
        %vm686 = vcmp.eq.s32.totalorder %v622, %v670
        %v687 = vsel %vm671, %v412, 0.0
        %v688 = vsel %vm672, %v413, 0.0
        %v689 = vsel %vm673, %v414, 0.0
        %v690 = vsel %vm674, %v415, 0.0
        %v691 = vsel %vm675, %v416, 0.0
        %v692 = vsel %vm676, %v417, 0.0
        %v693 = vsel %vm677, %v418, 0.0
        %v694 = vsel %vm678, %v419, 0.0
        %v695 = vsel %vm679, %v420, 0.0
        %v696 = vsel %vm680, %v421, 0.0
        %v697 = vsel %vm681, %v422, 0.0
        %v698 = vsel %vm682, %v423, 0.0
        %v699 = vsel %vm683, %v424, 0.0
        %v700 = vsel %vm684, %v425, 0.0
        %v701 = vsel %vm685, %v426, 0.0
        %v702 = vsel %vm686, %v427, 0.0
        %v703 = vsel %vm428, %v687, 0.0
        %704 = vadd.xlane.f32.xlu0 %v703
        %v705 = vpop.xlane.xlu0 %704
        %v706 = vsel %vm428, %v688, 0.0
        %707 = vadd.xlane.f32.xlu0 %v706
        %v708 = vpop.xlane.xlu0 %707
        %v709 = vsel %vm428, %v689, 0.0
        %710 = vadd.xlane.f32.xlu0 %v709
        %v711 = vpop.xlane.xlu0 %710
        %v712 = vsel %vm428, %v690, 0.0
        %713 = vadd.xlane.f32.xlu0 %v712
        %v714 = vpop.xlane.xlu0 %713
        %v715 = vsel %vm428, %v691, 0.0
        %716 = vadd.xlane.f32.xlu0 %v715
        %v717 = vpop.xlane.xlu0 %716
        %v718 = vsel %vm428, %v692, 0.0
        %719 = vadd.xlane.f32.xlu0 %v718
        %v720 = vpop.xlane.xlu0 %719
        %v721 = vsel %vm428, %v693, 0.0
        %722 = vadd.xlane.f32.xlu0 %v721
        %v723 = vpop.xlane.xlu0 %722
        %v724 = vsel %vm428, %v694, 0.0
        %725 = vadd.xlane.f32.xlu0 %v724
        %v726 = vpop.xlane.xlu0 %725
        %v727 = vsel %vm428, %v695, 0.0
        %728 = vadd.xlane.f32.xlu0 %v727
        %v729 = vpop.xlane.xlu0 %728
        %v730 = vsel %vm428, %v696, 0.0
        %731 = vadd.xlane.f32.xlu0 %v730
        %v732 = vpop.xlane.xlu0 %731
        %v733 = vsel %vm428, %v697, 0.0
        %734 = vadd.xlane.f32.xlu0 %v733
        %v735 = vpop.xlane.xlu0 %734
        %v736 = vsel %vm428, %v698, 0.0
        %737 = vadd.xlane.f32.xlu0 %v736
        %v738 = vpop.xlane.xlu0 %737
        %v739 = vsel %vm428, %v699, 0.0
        %740 = vadd.xlane.f32.xlu0 %v739
        %v741 = vpop.xlane.xlu0 %740
        %v742 = vsel %vm428, %v700, 0.0
        %743 = vadd.xlane.f32.xlu0 %v742
        %v744 = vpop.xlane.xlu0 %743
        %v745 = vsel %vm428, %v701, 0.0
        %746 = vadd.xlane.f32.xlu0 %v745
        %v747 = vpop.xlane.xlu0 %746
        %v748 = vsel %vm428, %v702, 0.0
        %749 = vadd.xlane.f32.xlu0 %v748
        %v750 = vpop.xlane.xlu0 %749
        %v751 = vsel %vm428, %v412, 0.0
        %752 = vadd.xlane.f32.xlu0 %v751
        %v753 = vpop.xlane.xlu0 %752
        %v754 = vsel %vm428, %v413, 0.0
        %755 = vadd.xlane.f32.xlu0 %v754
        %v756 = vpop.xlane.xlu0 %755
        %v757 = vsel %vm428, %v414, 0.0
        %758 = vadd.xlane.f32.xlu0 %v757
        %v759 = vpop.xlane.xlu0 %758
        %v760 = vsel %vm428, %v415, 0.0
        %761 = vadd.xlane.f32.xlu0 %v760
        %v762 = vpop.xlane.xlu0 %761
        %v763 = vsel %vm428, %v416, 0.0
        %764 = vadd.xlane.f32.xlu0 %v763
        %v765 = vpop.xlane.xlu0 %764
        %v766 = vsel %vm428, %v417, 0.0
        %767 = vadd.xlane.f32.xlu0 %v766
        %v768 = vpop.xlane.xlu0 %767
        %v769 = vsel %vm428, %v418, 0.0
        %770 = vadd.xlane.f32.xlu0 %v769
        %v771 = vpop.xlane.xlu0 %770
        %v772 = vsel %vm428, %v419, 0.0
        %773 = vadd.xlane.f32.xlu0 %v772
        %v774 = vpop.xlane.xlu0 %773
        %v775 = vsel %vm428, %v420, 0.0
        %776 = vadd.xlane.f32.xlu0 %v775
        %v777 = vpop.xlane.xlu0 %776
        %v778 = vsel %vm428, %v421, 0.0
        %779 = vadd.xlane.f32.xlu0 %v778
        %v780 = vpop.xlane.xlu0 %779
        %v781 = vsel %vm428, %v422, 0.0
        %782 = vadd.xlane.f32.xlu0 %v781
        %v783 = vpop.xlane.xlu0 %782
        %v784 = vsel %vm428, %v423, 0.0
        %785 = vadd.xlane.f32.xlu0 %v784
        %v786 = vpop.xlane.xlu0 %785
        %v787 = vsel %vm428, %v424, 0.0
        %788 = vadd.xlane.f32.xlu0 %v787
        %v789 = vpop.xlane.xlu0 %788
        %v790 = vsel %vm428, %v425, 0.0
        %791 = vadd.xlane.f32.xlu0 %v790
        %v792 = vpop.xlane.xlu0 %791
        %v793 = vsel %vm428, %v426, 0.0
        %794 = vadd.xlane.f32.xlu0 %v793
        %v795 = vpop.xlane.xlu0 %794
        %v796 = vsel %vm428, %v427, 0.0
        %797 = vadd.xlane.f32.xlu0 %v796
        %v798 = vpop.xlane.xlu0 %797
        %v799 = vmul.f32 %v753, 0.03125
        %v800 = vmul.f32 %v756, 0.03125
        %v801 = vmul.f32 %v759, 0.03125
        %v802 = vmul.f32 %v762, 0.03125
        %v803 = vmul.f32 %v765, 0.03125
        %v804 = vmul.f32 %v768, 0.03125
        %v805 = vmul.f32 %v771, 0.03125
        %v806 = vmul.f32 %v774, 0.03125
        %v807 = vmul.f32 %v777, 0.03125
        %v808 = vmul.f32 %v780, 0.03125
        %v809 = vmul.f32 %v783, 0.03125
        %v810 = vmul.f32 %v786, 0.03125
        %v811 = vmul.f32 %v789, 0.03125
        %v812 = vmul.f32 %v792, 0.03125
        %v813 = vmul.f32 %v795, 0.03125
        %v814 = vmul.f32 %v798, 0.03125
        %v815 = vsub.f32 %v605, %v705
        %v816 = vsub.f32 %v606, %v708
        %v817 = vsub.f32 %v607, %v711
        %v818 = vsub.f32 %v608, %v714
        %v819 = vsub.f32 %v609, %v717
        %v820 = vsub.f32 %v610, %v720
        %v821 = vsub.f32 %v611, %v723
        %v822 = vsub.f32 %v612, %v726
        %v823 = vsub.f32 %v613, %v729
        %v824 = vsub.f32 %v614, %v732
        %v825 = vsub.f32 %v615, %v735
        %v826 = vsub.f32 %v616, %v738
        %v827 = vsub.f32 %v617, %v741
        %v828 = vsub.f32 %v618, %v744
        %v829 = vsub.f32 %v619, %v747
        %v830 = vsub.f32 %v620, %v750
        %v831 = vmul.f32 %v815, 0.95
        %v832 = vmul.f32 %v816, 0.95
        %v833 = vmul.f32 %v817, 0.95
        %v834 = vmul.f32 %v818, 0.95
        %v835 = vmul.f32 %v819, 0.95
        %v836 = vmul.f32 %v820, 0.95
        %v837 = vmul.f32 %v821, 0.95
        %v838 = vmul.f32 %v822, 0.95
        %v839 = vmul.f32 %v823, 0.95
        %v840 = vmul.f32 %v824, 0.95
        %v841 = vmul.f32 %v825, 0.95
        %v842 = vmul.f32 %v826, 0.95
        %v843 = vmul.f32 %v827, 0.95
        %v844 = vmul.f32 %v828, 0.95
        %v845 = vmul.f32 %v829, 0.95
        %v846 = vmul.f32 %v830, 0.95
        %v847 = vsub.f32 %v605, %v799
        %v848 = vsub.f32 %v606, %v800
        %v849 = vsub.f32 %v607, %v801
        %v850 = vsub.f32 %v608, %v802
        %v851 = vsub.f32 %v609, %v803
        %v852 = vsub.f32 %v610, %v804
        %v853 = vsub.f32 %v611, %v805
        %v854 = vsub.f32 %v612, %v806
        %v855 = vsub.f32 %v613, %v807
        %v856 = vsub.f32 %v614, %v808
        %v857 = vsub.f32 %v615, %v809
        %v858 = vsub.f32 %v616, %v810
        %v859 = vsub.f32 %v617, %v811
        %v860 = vsub.f32 %v618, %v812
        %v861 = vsub.f32 %v619, %v813
        %v862 = vsub.f32 %v620, %v814
        %v863 = vmul.f32 %v847, 0.05
        %v864 = vmul.f32 %v848, 0.05
        %v865 = vmul.f32 %v849, 0.05
        %v866 = vmul.f32 %v850, 0.05
        %v867 = vmul.f32 %v851, 0.05
        %v868 = vmul.f32 %v852, 0.05
        %v869 = vmul.f32 %v853, 0.05
        %v870 = vmul.f32 %v854, 0.05
        %v871 = vmul.f32 %v855, 0.05
        %v872 = vmul.f32 %v856, 0.05
        %v873 = vmul.f32 %v857, 0.05
        %v874 = vmul.f32 %v858, 0.05
        %v875 = vmul.f32 %v859, 0.05
        %v876 = vmul.f32 %v860, 0.05
        %v877 = vmul.f32 %v861, 0.05
        %v878 = vmul.f32 %v862, 0.05
        %v879 = vadd.f32 %v831, %v863
        %v880 = vadd.f32 %v832, %v864
        %v881 = vadd.f32 %v833, %v865
        %v882 = vadd.f32 %v834, %v866
        %v883 = vadd.f32 %v835, %v867
        %v884 = vadd.f32 %v836, %v868
        %v885 = vadd.f32 %v837, %v869
        %v886 = vadd.f32 %v838, %v870
        %v887 = vadd.f32 %v839, %v871
        %v888 = vadd.f32 %v840, %v872
        %v889 = vadd.f32 %v841, %v873
        %v890 = vadd.f32 %v842, %v874
        %v891 = vadd.f32 %v843, %v875
        %v892 = vadd.f32 %v844, %v876
        %v893 = vadd.f32 %v845, %v877
        %v894 = vadd.f32 %v846, %v878
        %v895 = vsel %vm364, %v879, 0.0
        %v896 = vsel %vm365, %v880, 0.0
        %v897 = vsel %vm366, %v881, 0.0
        %v898 = vsel %vm367, %v882, 0.0
        %v899 = vsel %vm368, %v883, 0.0
        %v900 = vsel %vm369, %v884, 0.0
        %v901 = vsel %vm370, %v885, 0.0
        %v902 = vsel %vm371, %v886, 0.0
        %v903 = vsel %vm372, %v887, 0.0
        %v904 = vsel %vm373, %v888, 0.0
        %v905 = vsel %vm374, %v889, 0.0
        %v906 = vsel %vm375, %v890, 0.0
        %v907 = vsel %vm376, %v891, 0.0
        %v908 = vsel %vm377, %v892, 0.0
        %v909 = vsel %vm378, %v893, 0.0
        %v910 = vsel %vm379, %v894, 0.0
        %v911 = vld [vmem:[#allocation2] sm:$0xff]
        %v912 = vld [vmem:[#allocation2 + $0x8] sm:$0xff]
        %v913 = vld [vmem:[#allocation2 + $0x10] sm:$0xff]
        %v914 = vld [vmem:[#allocation2 + $0x18] sm:$0xff]
        %v915 = vld [vmem:[#allocation2 + $0x20] sm:$0xff]
        %v916 = vld [vmem:[#allocation2 + $0x28] sm:$0xff]
        %v917 = vld [vmem:[#allocation2 + $0x30] sm:$0xff]
        %v918 = vld [vmem:[#allocation2 + $0x38] sm:$0xff]
        %v919 = vld [vmem:[#allocation2 + $0x40] sm:$0xff]
        %v920 = vld [vmem:[#allocation2 + $0x48] sm:$0xff]
        %v921 = vld [vmem:[#allocation2 + $0x50] sm:$0xff]
        %v922 = vld [vmem:[#allocation2 + $0x58] sm:$0xff]
        %v923 = vld [vmem:[#allocation2 + $0x60] sm:$0xff]
        %v924 = vld [vmem:[#allocation2 + $0x68] sm:$0xff]
        %v925 = vld [vmem:[#allocation2 + $0x70] sm:$0xff]
        %v926 = vld [vmem:[#allocation2 + $0x78] sm:$0xff]
        %v927 = vadd.f32 %v911, %v895
        %v928 = vadd.f32 %v912, %v896
        %v929 = vadd.f32 %v913, %v897
        %v930 = vadd.f32 %v914, %v898
        %v931 = vadd.f32 %v915, %v899
        %v932 = vadd.f32 %v916, %v900
        %v933 = vadd.f32 %v917, %v901
        %v934 = vadd.f32 %v918, %v902
        %v935 = vadd.f32 %v919, %v903
        %v936 = vadd.f32 %v920, %v904
        %v937 = vadd.f32 %v921, %v905
        %v938 = vadd.f32 %v922, %v906
        %v939 = vadd.f32 %v923, %v907
        %v940 = vadd.f32 %v924, %v908
        %v941 = vadd.f32 %v925, %v909
        %v942 = vadd.f32 %v926, %v910
        %vm943 = vcmask 7168
        %944 = vst.msk [vmem:[#allocation2] sm:$0xff] %vm943, %v927
        %945 = vst.msk [vmem:[#allocation2 + $0x8] sm:$0xff] %vm943, %v928
        %946 = vst.msk [vmem:[#allocation2 + $0x10] sm:$0xff] %vm943, %v929
        %947 = vst.msk [vmem:[#allocation2 + $0x18] sm:$0xff] %vm943, %v930
        %948 = vst.msk [vmem:[#allocation2 + $0x20] sm:$0xff] %vm943, %v931
        %949 = vst.msk [vmem:[#allocation2 + $0x28] sm:$0xff] %vm943, %v932
        %950 = vst.msk [vmem:[#allocation2 + $0x30] sm:$0xff] %vm943, %v933
        %951 = vst.msk [vmem:[#allocation2 + $0x38] sm:$0xff] %vm943, %v934
        %952 = vst.msk [vmem:[#allocation2 + $0x40] sm:$0xff] %vm943, %v935
        %953 = vst.msk [vmem:[#allocation2 + $0x48] sm:$0xff] %vm943, %v936
        %954 = vst.msk [vmem:[#allocation2 + $0x50] sm:$0xff] %vm943, %v937
        %955 = vst.msk [vmem:[#allocation2 + $0x58] sm:$0xff] %vm943, %v938
        %956 = vst.msk [vmem:[#allocation2 + $0x60] sm:$0xff] %vm943, %v939
        %957 = vst.msk [vmem:[#allocation2 + $0x68] sm:$0xff] %vm943, %v940
        %958 = vst.msk [vmem:[#allocation2 + $0x70] sm:$0xff] %vm943, %v941
        %959 = vst.msk [vmem:[#allocation2 + $0x78] sm:$0xff] %vm943, %v942
        %p960 = scmp.eq.s32.totalorder %s21, 3
        // Predicated region
        $region33: #{tpu_custom_call.1} parent=27 // pred_check
          %p961 = pneg %p960
        $region34: #{tpu_custom_call.1} parent=27 // pred_check_branch
          %963 = sbr.rel (%p961) target = $region36
        $region35: #{tpu_custom_call.1} parent=27 // pred_region
          %v964 = vld [vmem:[#allocation2] sm:$0xff]
          %v965 = vld [vmem:[#allocation2 + $0x8] sm:$0xff]
          %v966 = vld [vmem:[#allocation2 + $0x10] sm:$0xff]
          %v967 = vld [vmem:[#allocation2 + $0x18] sm:$0xff]
          %v968 = vld [vmem:[#allocation2 + $0x20] sm:$0xff]
          %v969 = vld [vmem:[#allocation2 + $0x28] sm:$0xff]
          %v970 = vld [vmem:[#allocation2 + $0x30] sm:$0xff]
          %v971 = vld [vmem:[#allocation2 + $0x38] sm:$0xff]
          %v972 = vld [vmem:[#allocation2 + $0x40] sm:$0xff]
          %v973 = vld [vmem:[#allocation2 + $0x48] sm:$0xff]
          %v974 = vld [vmem:[#allocation2 + $0x50] sm:$0xff]
          %v975 = vld [vmem:[#allocation2 + $0x58] sm:$0xff]
          %v976 = vld [vmem:[#allocation2 + $0x60] sm:$0xff]
          %v977 = vld [vmem:[#allocation2 + $0x68] sm:$0xff]
          %v978 = vld [vmem:[#allocation2 + $0x70] sm:$0xff]
          %v979 = vld [vmem:[#allocation2 + $0x78] sm:$0xff]
          %v980 = vsel %vm943, %v964, 0.0
          %v981 = vsel %vm943, %v965, 0.0
          %v982 = vadd.f32 %v980, %v981
          %v983 = vsel %vm943, %v966, 0.0
          %v984 = vadd.f32 %v982, %v983
          %v985 = vsel %vm943, %v967, 0.0
          %v986 = vadd.f32 %v984, %v985
          %v987 = vsel %vm943, %v968, 0.0
          %v988 = vadd.f32 %v986, %v987
          %v989 = vsel %vm943, %v969, 0.0
          %v990 = vadd.f32 %v988, %v989
          %v991 = vsel %vm943, %v970, 0.0
          %v992 = vadd.f32 %v990, %v991
          %v993 = vsel %vm943, %v971, 0.0
          %v994 = vadd.f32 %v992, %v993
          %v995 = vsel %vm943, %v972, 0.0
          %v996 = vadd.f32 %v994, %v995
          %v997 = vsel %vm943, %v973, 0.0
          %v998 = vadd.f32 %v996, %v997
          %v999 = vsel %vm943, %v974, 0.0
          %v1000 = vadd.f32 %v998, %v999
          %v1001 = vsel %vm943, %v975, 0.0
          %v1002 = vadd.f32 %v1000, %v1001
          %v1003 = vsel %vm943, %v976, 0.0
          %v1004 = vadd.f32 %v1002, %v1003
          %v1005 = vsel %vm943, %v977, 0.0
          %v1006 = vadd.f32 %v1004, %v1005
          %v1007 = vsel %vm943, %v978, 0.0
          %v1008 = vadd.f32 %v1006, %v1007
          %v1009 = vsel %vm943, %v979, 0.0
          %v1010 = vadd.f32 %v1008, %v1009
          %1011 = vadd.xlane.f32.xlu0 %v1010
          %v1012 = vpop.xlane.xlu0 %1011
          %v1013 = vrot.slane %v1012, 4
          %v1014 = vadd.f32 %v1012, %v1013
          %v1015 = vrot.slane %v1014, 2
          %v1016 = vadd.f32 %v1014, %v1015
          %v1017 = vrot.slane %v1016, 1
          %v1018 = vadd.f32 %v1016, %v1017
          %s1019 = vtos %v1018
          %v1020 = vstv %s1019
          %1021 = vst [vmem:[%s229] sm:$0xff] %v1020
        $region36: #{tpu_custom_call.1} parent=27 // pred_fallthru
          _
        %s1022 = sand.u32 %s104, 1
        %s1023 = scalar_lea.sflag [#allocation4], %s1022
        %s1024 = sand.u32 %s104, 1
        %s1025 = smul.addr %s1024, 8
        %s1026 = scalar_lea.vmem [#allocation3], %s1025
        // Predicated region
        $region37: #{tpu_custom_call.1} parent=27 // pred_check
          %p1027 = pneg %p114
        $region38: #{tpu_custom_call.1} parent=27 // pred_check_branch
          %1029 = sbr.rel (%p1027) target = $region40
        $region39: #{tpu_custom_call.1} parent=27 // pred_region
          %s1031 = ssub.s32 128, 128
          %1032 = vsyncadd %s1023, %s1031
          %s1033 = smul.addr %s20, 128
          %s1034 = scalar_lea.hbm %s2, %s1033
          %s1036 = sshll.u32 %s1026, 4
          %s1037 = int_to_ptr.vmem [resolvable:$true] %s1036
          %1039 = dma.vmem_to_hbm [thread:$0]  %s1037, 128, %s1034, %s1023
        $region40: #{tpu_custom_call.1} parent=27 // pred_fallthru
          _
      $region28: #{tpu_custom_call.1} parent=5 // pred_fallthru
        _
      %p1040 = scmp.le.s32.totalorder 2, %s11
      // Predicated region
      $region41: #{tpu_custom_call.1} parent=5 // pred_check
        %p1041 = pneg %p1040
      $region42: #{tpu_custom_call.1} parent=5 // pred_check_branch
        %1043 = sbr.rel (%p1041) target = $region44
      $region43: #{tpu_custom_call.1} parent=5 // pred_region
        %s1044 = ssub.s32 %s11, 2
        // Predicated region
        $region45: #{tpu_custom_call.1} parent=43 // pred_check
          %p1045 = pneg %p120
        $region46: #{tpu_custom_call.1} parent=43 // pred_check_branch
          %1047 = sbr.rel (%p1045) target = $region48
        $region47: #{tpu_custom_call.1} parent=43 // pred_region
          %s1048 = sand.u32 %s105, 1
          %s1049 = scalar_lea.sflag [#allocation4], %s1048
          %s1050 = sand.u32 %s105, 1
          %s1051 = smul.addr %s1050, 8
          %s1052 = scalar_lea.vmem [#allocation3], %s1051
          %1053 = dma.done %s1049, 128
        $region48: #{tpu_custom_call.1} parent=43 // pred_fallthru
          _
      $region44: #{tpu_custom_call.1} parent=5 // pred_fallthru
        _
    $region6: #{tpu_custom_call.1} parent=1 // loop_footer
      %s15 = sadd.s32 1, %s11
    $region7: #{tpu_custom_call.1} parent=1 // loop_footer_branch
      %10 = sbr.rel target = $region3
    $region8: #{tpu_custom_call.1} parent=1 // loop_exit
      _
    %1054 = vsyncpa [#allocation4], 1
    %s1055 = scalar_lea.sflag [#allocation4], 1
    %1056 = vsyncpa %s1055, 1

</llo_original>
